<compile_context>
chip_gen: v5e
topology: v5e:2x2
jax: 0.10.0
libtpu: 0.0.40
codegen_flags: <defaults>
</compile_context>

<pallas_src>
import jax
import jax.numpy as jnp
from jax.experimental import pallas as pl
from jax.experimental.pallas import tpu as pltpu

# ----------------------------- static shapes --------------------------------
B, C, H, W = 2, 4, 16, 16          # images: [B, C, H, W] (NCHW, PyTorch layout)
PATCH = 4
P = (H // PATCH) * (W // PATCH)    # 16 patches per image
K = C * PATCH * PATCH              # 64 = per-patch feature dim
EMBED = 32                         # backbone embedding dim
HID = 64                           # head hidden dim
BOT = 32                           # head bottleneck dim
OUT = 128                          # head output (prototype) dim


# ------------------------------- fused kernel --------------------------------
def fused_kernel(patch_ref, wp_ref, w1_ref, bias_ref, w2_ref, wl_ref, out_ref):
    """Backbone embed + (teacher|student) heads fused, everything resident in VMEM.

    patch_ref: [B*P, K]   bf16   pre-permuted patches
    wp_ref:    [K, EMBED] bf16   patch-embed weight with 1/P mean-pool folded in
    w1_ref:    [EMBED, 2*HID]        bf16   teacher|student layer-1 (lane concat)
    bias_ref:  [1, 2*HID + 2*BOT]    f32    b1_t|b1_s|b2_t|b2_s
    w2_ref:    [2*HID, 2*BOT]        bf16   block-diagonal layer-2
    wl_ref:    [2*BOT, 2*OUT]        f32    block-diagonal, pre weight-normalized
    out_ref:   [B, 2*OUT]            f32    teacher in lanes 0..OUT-1, student after
    """
    # ---- Backbone: per-patch embed + mean pool (scale folded into wp) ----
    pe = jnp.dot(patch_ref[...], wp_ref[...],
                 preferred_element_type=jnp.float32)                 # [B*P, EMBED]
    # Per-image sum over the P patches: static sublane slices + sublane reduce.
    embed = jnp.concatenate(
        [jnp.sum(pe[b * P:(b + 1) * P, :], axis=0, keepdims=True) for b in range(B)],
        axis=0)                                                       # [B, EMBED]
    embed_bf = embed.astype(jnp.bfloat16)

    b1 = bias_ref[:, 0:2 * HID]                                       # [1, 2*HID]
    b2 = bias_ref[:, 2 * HID:2 * HID + 2 * BOT]                       # [1, 2*BOT]

    # ---- Layer 1 (teacher|student lane-concat) + GELU ----
    h = jnp.dot(embed_bf, w1_ref[...],
                preferred_element_type=jnp.float32) + b1              # [B, 2*HID]
    # TODO(synk): PyTorch nn.GELU defaults to the exact erf form; tanh approx kept
    # for a guaranteed EUP lowering (switch to approximate=False for erf parity).
    h = jax.nn.gelu(h, approximate=True)

    # ---- Layer 2 (block-diagonal) ----
    z = jnp.dot(h.astype(jnp.bfloat16), w2_ref[...],
                preferred_element_type=jnp.float32) + b2              # [B, 2*BOT]

    # ---- Per-head L2 norm over two static 32-lane segments ----
    zt = z[:, 0:BOT]
    zs = z[:, BOT:2 * BOT]
    zt = zt * jax.lax.rsqrt(jnp.sum(zt * zt, axis=-1, keepdims=True) + 1e-12)
    zs = zs * jax.lax.rsqrt(jnp.sum(zs * zs, axis=-1, keepdims=True) + 1e-12)
    zn = jnp.concatenate([zt, zs], axis=-1)                           # [B, 2*BOT]

    # ---- Final weight-normalized layer (block-diag, f32) -> one lane-dense store ----
    out_ref[...] = jnp.dot(zn, wl_ref[...],
                           preferred_element_type=jnp.float32)        # [B, 2*OUT]


# ------------------------------ wrapper ---------------------------------------
def _vmem_spec():
    return pl.BlockSpec(memory_space=pltpu.MemorySpace.VMEM)


@jax.jit
def teacher_student_forward(images, backbone_prep, heads_prep):
    """TeacherStudentCombo.forward with args.train_backbone=False:
       shared (teacher) backbone embedding, then both heads — one pallas_call."""
    # Patchify in XLA (tiny 8 KiB permute) so the kernel contracts only K=64 deep.
    x = images.reshape(B, C, H // PATCH, PATCH, W // PATCH, PATCH)
    x = jnp.transpose(x, (0, 2, 4, 1, 3, 5)).reshape(B * P, K).astype(jnp.bfloat16)

    out = pl.pallas_call(
        fused_kernel,
        out_shape=jax.ShapeDtypeStruct((B, 2 * OUT), jnp.float32),
        in_specs=[_vmem_spec() for _ in range(6)],
        out_specs=_vmem_spec(),
    )(x, backbone_prep["wpatch"], heads_prep["w1"], heads_prep["bias"],
      heads_prep["w2"], heads_prep["wlast"])

    return out[:, :OUT], out[:, OUT:]        # (teacher, student)


# --------------------- one-time parameter preprocessing -----------------------
def prepare_backbone_params(backbone_params):
    """Fold the 1/P mean-pool scale into the patch-embed weight; cast to bf16."""
    return {"wpatch": (backbone_params["wpatch"] / P).astype(jnp.bfloat16)}  # [K, EMBED]


def prepare_head_params(teacher_head, student_head):
    """Pack both heads into 4 arrays:
       - layer 1 lane-concat, layers 2/3 block-diagonal,
       - all biases into a single row vector,
       - data-independent weight-norm of the last layer hoisted here.
    Re-run this whenever the (student) head weights change during training."""
    def wnorm(wl):
        return wl * jax.lax.rsqrt(jnp.sum(wl * wl, axis=0, keepdims=True) + 1e-12)

    w1 = jnp.concatenate([teacher_head["w1"], student_head["w1"]],
                         axis=1).astype(jnp.bfloat16)                 # [EMBED, 2*HID]

    bias = jnp.concatenate([teacher_head["b1"], student_head["b1"],
                            teacher_head["b2"], student_head["b2"]],
                           axis=1).astype(jnp.float32)                # [1, 2*HID+2*BOT]

    w2 = jnp.zeros((2 * HID, 2 * BOT), jnp.float32)
    w2 = w2.at[0:HID, 0:BOT].set(teacher_head["w2"])
    w2 = w2.at[HID:2 * HID, BOT:2 * BOT].set(student_head["w2"])
    w2 = w2.astype(jnp.bfloat16)                                      # [2*HID, 2*BOT]

    wl = jnp.zeros((2 * BOT, 2 * OUT), jnp.float32)
    wl = wl.at[0:BOT, 0:OUT].set(wnorm(teacher_head["wlast"]))
    wl = wl.at[BOT:2 * BOT, OUT:2 * OUT].set(wnorm(student_head["wlast"]))

    return {"w1": w1, "bias": bias, "w2": w2, "wlast": wl}


# ------------------------------ references ------------------------------------
def reference_forward(images, backbone_params, teacher_head, student_head):
    """Pure-JAX f32 reference of the original (un-fused, un-packed) forward math."""
    x = images.reshape(B, C, H // PATCH, PATCH, W // PATCH, PATCH)
    x = jnp.transpose(x, (0, 2, 4, 1, 3, 5)).reshape(B, P, K)
    embed = jnp.mean(x @ backbone_params["wpatch"], axis=1)          # [B, EMBED]

    def head(p):
        h = jax.nn.gelu(embed @ p["w1"] + p["b1"], approximate=True)
        z = h @ p["w2"] + p["b2"]
        z = z * jax.lax.rsqrt(jnp.sum(z * z, axis=-1, keepdims=True) + 1e-12)
        wl = p["wlast"]
        wl = wl * jax.lax.rsqrt(jnp.sum(wl * wl, axis=0, keepdims=True) + 1e-12)
        return z @ wl

    return head(teacher_head), head(student_head)


# --------------------------- parameter init -----------------------------------
def init_head_params(key):
    k1, k2, k3 = jax.random.split(key, 3)
    return {
        "w1": jax.random.normal(k1, (EMBED, HID), jnp.float32) * 0.02,
        "b1": jnp.zeros((1, HID), jnp.float32),
        "w2": jax.random.normal(k2, (HID, BOT), jnp.float32) * 0.02,
        "b2": jnp.zeros((1, BOT), jnp.float32),
        "wlast": jax.random.normal(k3, (BOT, OUT), jnp.float32) * 0.02,
    }


if __name__ == "__main__":
    root = jax.random.PRNGKey(0)
    k_img, k_bb, k_student, k_teacher = jax.random.split(root, 4)

    images = jax.random.normal(k_img, (B, C, H, W), jnp.float32)

    # Shared backbone (student.backbone = teacher.backbone when not training it).
    backbone_params = {
        "wpatch": jax.random.normal(k_bb, (K, EMBED), jnp.float32) * 0.02,
    }
    # NOTE: in the original module the teacher is initialized as a copy of the
    # student; independent inits keep the two branches distinguishable here.
    student_head = init_head_params(k_student)
    teacher_head = init_head_params(k_teacher)

    # One-time parameter prep: fold pool scale, pack/block-diag both heads,
    # hoist weight-norm, cast MXU operands to bf16.
    backbone_prep = prepare_backbone_params(backbone_params)
    heads_prep = prepare_head_params(teacher_head, student_head)

    teacher_out, student_out = teacher_student_forward(images, backbone_prep, heads_prep)
    jax.block_until_ready((teacher_out, student_out))

    assert teacher_out.shape == (B, OUT) and student_out.shape == (B, OUT)
    assert teacher_out.dtype == jnp.float32 and student_out.dtype == jnp.float32

    # Loose-tolerance check vs. the plain-JAX f32 reference (kernel uses bf16 MXU inputs).
    ref_t, ref_s = reference_forward(images, backbone_params, teacher_head, student_head)
    assert jnp.allclose(teacher_out, ref_t, atol=2e-2, rtol=1e-1)
    assert jnp.allclose(student_out, ref_s, atol=2e-2, rtol=1e-1)

    print("KERNEL_OK")
</pallas_src>

<mosaic_0001>
module attributes {stable_mosaic.version = 11 : i64} {
  func.func @fused_kernel(%arg0: memref<32x64xbf16, #tpu.memory_space<vmem>>, %arg1: memref<64x32xbf16, #tpu.memory_space<vmem>>, %arg2: memref<32x128xbf16, #tpu.memory_space<vmem>>, %arg3: memref<1x192xf32, #tpu.memory_space<vmem>>, %arg4: memref<128x64xbf16, #tpu.memory_space<vmem>>, %arg5: memref<64x256xf32, #tpu.memory_space<vmem>>, %arg6: memref<2x256xf32, #tpu.memory_space<vmem>>) attributes {dimension_semantics = [], scalar_prefetch = 0 : i64, scratch_operands = 0 : i64, tpu.core_type = #tpu.core_type<tc>} {
    %c0 = arith.constant 0 : index
    %c0_0 = arith.constant 0 : index
    %0 = vector.load %arg0[%c0, %c0_0] : memref<32x64xbf16, #tpu.memory_space<vmem>>, vector<32x64xbf16>
    %c0_1 = arith.constant 0 : index
    %c0_2 = arith.constant 0 : index
    %1 = vector.load %arg1[%c0_1, %c0_2] : memref<64x32xbf16, #tpu.memory_space<vmem>>, vector<64x32xbf16>
    %cst = arith.constant dense<0.000000e+00> : vector<32x32xf32>
    %2 = tpu.matmul %0, %1, %cst {dimension_numbers = #tpu.dot_dimension_numbers<[1], [0], [0], [1], [0, 0, 1, 1], [], []>} : vector<32x64xbf16>, vector<64x32xbf16>, vector<32x32xf32> -> vector<32x32xf32>
    %3 = vector.extract_strided_slice %2 {offsets = [0, 0], sizes = [16, 32], strides = [1, 1]} : vector<32x32xf32> to vector<16x32xf32>
    %cst_3 = arith.constant dense<0.000000e+00> : vector<32xf32>
    %4 = vector.multi_reduction <add>, %3, %cst_3 [0] : vector<16x32xf32> to vector<32xf32>
    %5 = vector.shape_cast %4 : vector<32xf32> to vector<1x32xf32>
    %6 = vector.extract_strided_slice %2 {offsets = [16, 0], sizes = [16, 32], strides = [1, 1]} : vector<32x32xf32> to vector<16x32xf32>
    %cst_4 = arith.constant dense<0.000000e+00> : vector<32xf32>
    %7 = vector.multi_reduction <add>, %6, %cst_4 [0] : vector<16x32xf32> to vector<32xf32>
    %8 = vector.shape_cast %7 : vector<32xf32> to vector<1x32xf32>
    %9 = tpu.concatenate %5, %8 in 0 : vector<1x32xf32>, vector<1x32xf32> -> vector<2x32xf32>
    %10 = arith.truncf %9 : vector<2x32xf32> to vector<2x32xbf16>
    %c0_5 = arith.constant 0 : index
    %c0_6 = arith.constant 0 : index
    %11 = vector.load %arg3[%c0_5, %c0_6] : memref<1x192xf32, #tpu.memory_space<vmem>>, vector<1x128xf32>
    %c0_7 = arith.constant 0 : index
    %c128 = arith.constant 128 : index
    %12 = vector.load %arg3[%c0_7, %c128] : memref<1x192xf32, #tpu.memory_space<vmem>>, vector<1x64xf32>
    %c0_8 = arith.constant 0 : index
    %c0_9 = arith.constant 0 : index
    %13 = vector.load %arg2[%c0_8, %c0_9] : memref<32x128xbf16, #tpu.memory_space<vmem>>, vector<32x128xbf16>
    %cst_10 = arith.constant dense<0.000000e+00> : vector<2x128xf32>
    %14 = tpu.matmul %10, %13, %cst_10 {dimension_numbers = #tpu.dot_dimension_numbers<[1], [0], [0], [1], [0, 0, 1, 1], [], []>} : vector<2x32xbf16>, vector<32x128xbf16>, vector<2x128xf32> -> vector<2x128xf32>
    %15 = vector.broadcast %11 : vector<1x128xf32> to vector<2x128xf32>
    %16 = arith.addf %14, %15 : vector<2x128xf32>
    %17 = arith.mulf %16, %16 : vector<2x128xf32>
    %18 = arith.mulf %16, %17 : vector<2x128xf32>
    %cst_11 = arith.constant 4.471500e-02 : f32
    %19 = vector.broadcast %cst_11 : f32 to vector<2x128xf32>
    %20 = arith.mulf %19, %18 : vector<2x128xf32>
    %21 = arith.addf %16, %20 : vector<2x128xf32>
    %cst_12 = arith.constant 0.797884583 : f32
    %22 = vector.broadcast %cst_12 : f32 to vector<2x128xf32>
    %23 = arith.mulf %22, %21 : vector<2x128xf32>
    %24 = math.tanh %23 : vector<2x128xf32>
    %cst_13 = arith.constant 1.000000e+00 : f32
    %25 = vector.broadcast %cst_13 : f32 to vector<2x128xf32>
    %26 = arith.addf %25, %24 : vector<2x128xf32>
    %cst_14 = arith.constant 5.000000e-01 : f32
    %27 = vector.broadcast %cst_14 : f32 to vector<2x128xf32>
    %28 = arith.mulf %27, %26 : vector<2x128xf32>
    %29 = arith.mulf %16, %28 : vector<2x128xf32>
    %30 = arith.truncf %29 : vector<2x128xf32> to vector<2x128xbf16>
    %c0_15 = arith.constant 0 : index
    %c0_16 = arith.constant 0 : index
    %31 = vector.load %arg4[%c0_15, %c0_16] : memref<128x64xbf16, #tpu.memory_space<vmem>>, vector<128x64xbf16>
    %cst_17 = arith.constant dense<0.000000e+00> : vector<2x64xf32>
    %32 = tpu.matmul %30, %31, %cst_17 {dimension_numbers = #tpu.dot_dimension_numbers<[1], [0], [0], [1], [0, 0, 1, 1], [], []>} : vector<2x128xbf16>, vector<128x64xbf16>, vector<2x64xf32> -> vector<2x64xf32>
    %33 = vector.broadcast %12 : vector<1x64xf32> to vector<2x64xf32>
    %34 = arith.addf %32, %33 : vector<2x64xf32>
    %35 = vector.extract_strided_slice %34 {offsets = [0, 0], sizes = [2, 32], strides = [1, 1]} : vector<2x64xf32> to vector<2x32xf32>
    %36 = vector.extract_strided_slice %34 {offsets = [0, 32], sizes = [2, 32], strides = [1, 1]} : vector<2x64xf32> to vector<2x32xf32>
    %37 = arith.mulf %35, %35 : vector<2x32xf32>
    %cst_18 = arith.constant dense<0.000000e+00> : vector<2xf32>
    %38 = vector.multi_reduction <add>, %37, %cst_18 [1] : vector<2x32xf32> to vector<2xf32>
    %39 = vector.shape_cast %38 : vector<2xf32> to vector<2x1xf32>
    %cst_19 = arith.constant 9.99999996E-13 : f32
    %40 = vector.broadcast %cst_19 : f32 to vector<2x1xf32>
    %41 = arith.addf %39, %40 : vector<2x1xf32>
    %42 = math.rsqrt %41 : vector<2x1xf32>
    %43 = vector.broadcast %42 : vector<2x1xf32> to vector<2x32xf32>
    %44 = arith.mulf %35, %43 : vector<2x32xf32>
    %45 = arith.mulf %36, %36 : vector<2x32xf32>
    %cst_20 = arith.constant dense<0.000000e+00> : vector<2xf32>
    %46 = vector.multi_reduction <add>, %45, %cst_20 [1] : vector<2x32xf32> to vector<2xf32>
    %47 = vector.shape_cast %46 : vector<2xf32> to vector<2x1xf32>
    %cst_21 = arith.constant 9.99999996E-13 : f32
    %48 = vector.broadcast %cst_21 : f32 to vector<2x1xf32>
    %49 = arith.addf %47, %48 : vector<2x1xf32>
    %50 = math.rsqrt %49 : vector<2x1xf32>
    %51 = vector.broadcast %50 : vector<2x1xf32> to vector<2x32xf32>
    %52 = arith.mulf %36, %51 : vector<2x32xf32>
    %53 = tpu.concatenate %44, %52 in 1 : vector<2x32xf32>, vector<2x32xf32> -> vector<2x64xf32>
    %c0_22 = arith.constant 0 : index
    %c0_23 = arith.constant 0 : index
    %54 = vector.load %arg5[%c0_22, %c0_23] : memref<64x256xf32, #tpu.memory_space<vmem>>, vector<64x256xf32>
    %cst_24 = arith.constant dense<0.000000e+00> : vector<2x256xf32>
    %55 = tpu.matmul %53, %54, %cst_24 {dimension_numbers = #tpu.dot_dimension_numbers<[1], [0], [0], [1], [0, 0, 1, 1], [], []>} : vector<2x64xf32>, vector<64x256xf32>, vector<2x256xf32> -> vector<2x256xf32>
    %c0_25 = arith.constant 0 : index
    %c0_26 = arith.constant 0 : index
    %56 = vector.load %arg6[%c0_25, %c0_26] : memref<2x256xf32, #tpu.memory_space<vmem>>, vector<2x256xf32>
    tpu.vector_store %arg6[%c0_25, %c0_26], %55 {strides = array<i32>} : memref<2x256xf32, #tpu.memory_space<vmem>>, vector<2x256xf32>,
    return
  }
}

</mosaic_0001>

<llo_original>
// kernel: teacher_student_forward.1
$region0: #{teacher_student_forward.1}
  #allocation0 [shape = 'u32[]', space=smem, size = 0x4, offset = 0x4, fixed_abs, tag = 'smem constant byte address 0x4 - core index']
  #allocation1 [shape = 'u32[72,128]{1,0:T(1,128)}', space=vmem, size = 0x9000, scoped, tag = 'internal scratch']
  %s0 = inlined_call_operand.vmem [shape: bf16[32,64], index: 0, kind: input, shape index: {}]
  %s1 = inlined_call_operand.vmem [shape: bf16[64,32], index: 1, kind: input, shape index: {}]
  %s2 = inlined_call_operand.vmem [shape: bf16[32,128], index: 2, kind: input, shape index: {}]
  %s3 = inlined_call_operand.vmem [shape: f32[1,192], index: 3, kind: input, shape index: {}]
  %s4 = inlined_call_operand.vmem [shape: bf16[128,64], index: 4, kind: input, shape index: {}]
  %s5 = inlined_call_operand.vmem [shape: f32[64,256], index: 5, kind: input, shape index: {}]
  %s6 = inlined_call_operand.vmem [shape: f32[2,256], index: 6, kind: output, shape index: {}]
  %s7 = sld [smem:[#allocation0]]
  $region34: #{teacher_student_forward.1} parent=0
    _
  %s9 = ssub.s32 1, %s7
  %s10 = scalar_select 0, %s9, %s7
  // Predicated region
  $region2: #{teacher_student_forward.1} parent=0 // pred_check
    _
  $region3: #{teacher_student_forward.1} parent=0 // pred_check_branch
    %12 = sbr.rel (0) target = $region5
  $region4: #{teacher_student_forward.1} parent=0 // pred_region
    _
  $region5: #{teacher_student_forward.1} parent=0 // pred_fallthru
    _
  // Predicated region
  $region6: #{teacher_student_forward.1} parent=0 // pred_check
    _
  $region7: #{teacher_student_forward.1} parent=0 // pred_check_branch
    %14 = sbr.rel (0) target = $region9
  $region8: #{teacher_student_forward.1} parent=0 // pred_region
    _
  $region9: #{teacher_student_forward.1} parent=0 // pred_fallthru
    _
  // Predicated region
  $region10: #{teacher_student_forward.1} parent=0 // pred_check
    _
  $region11: #{teacher_student_forward.1} parent=0 // pred_check_branch
    %16 = sbr.rel (0) target = $region13
  $region12: #{teacher_student_forward.1} parent=0 // pred_region
    _
  $region13: #{teacher_student_forward.1} parent=0 // pred_fallthru
    _
  // Predicated region
  $region14: #{teacher_student_forward.1} parent=0 // pred_check
    _
  $region15: #{teacher_student_forward.1} parent=0 // pred_check_branch
    %18 = sbr.rel (0) target = $region17
  $region16: #{teacher_student_forward.1} parent=0 // pred_region
    _
  $region17: #{teacher_student_forward.1} parent=0 // pred_fallthru
    _
  // Predicated region
  $region18: #{teacher_student_forward.1} parent=0 // pred_check
    _
  $region19: #{teacher_student_forward.1} parent=0 // pred_check_branch
    %20 = sbr.rel (0) target = $region21
  $region20: #{teacher_student_forward.1} parent=0 // pred_region
    _
  $region21: #{teacher_student_forward.1} parent=0 // pred_fallthru
    _
  // Predicated region
  $region22: #{teacher_student_forward.1} parent=0 // pred_check
    _
  $region23: #{teacher_student_forward.1} parent=0 // pred_check_branch
    %22 = sbr.rel (0) target = $region25
  $region24: #{teacher_student_forward.1} parent=0 // pred_region
    _
  $region25: #{teacher_student_forward.1} parent=0 // pred_fallthru
    _
  %v24 = vld [vmem:[%s0] sm:$0xf]
  %v25 = vld [vmem:[%s0 + $0x4] sm:$0xf]
  %v26 = vld [vmem:[%s0 + $0x8] sm:$0xf]
  %v27 = vld [vmem:[%s0 + $0xc] sm:$0xf]
  %v28 = vld [vmem:[%s1] sm:$0xf]
  %v29 = vld [vmem:[%s1 + $0x4] sm:$0xf]
  %v30 = vld [vmem:[%s1 + $0x8] sm:$0xf]
  %v31 = vld [vmem:[%s1 + $0xc] sm:$0xf]
  %v32 = vld [vmem:[%s1 + $0x10] sm:$0xf]
  %v33 = vld [vmem:[%s1 + $0x14] sm:$0xf]
  %v34 = vld [vmem:[%s1 + $0x18] sm:$0xf]
  %v35 = vld [vmem:[%s1 + $0x1c] sm:$0xf]
  %v40 = vunpack.c.l.b16 %v24
  %v41 = vunpack.c.l.b16 %v25
  %v42 = vunpack.c.l.b16 %v26
  %v43 = vunpack.c.l.b16 %v27
  %v44 = vpack.c.b16 %v41, %v40
  %v45 = vpack.c.b16 %v43, %v42
  %v54 = vunpack.c.l.b16 %v28
  %v55 = vunpack.c.l.b16 %v29
  %v56 = vunpack.c.l.b16 %v30
  %v57 = vunpack.c.l.b16 %v31
  %v58 = vunpack.c.l.b16 %v32
  %v59 = vunpack.c.l.b16 %v33
  %v60 = vunpack.c.l.b16 %v34
  %v61 = vunpack.c.l.b16 %v35
  %v62 = vpack.c.b16 %v55, %v54
  %v63 = vpack.c.b16 %v57, %v56
  %v64 = vpack.c.b16 %v59, %v58
  %v65 = vpack.c.b16 %v61, %v60
  %vm70 = vcmask 523264
  %v72 = vsel %vm70, %v44, 0
  %v75 = vsel %vm70, %v45, 0
  %77 = vmatpush.bf16.msra.mxu0 0
  %78 = vmatpush.bf16.msra.mxu0 0
  %79 = vmatpush.bf16.msra.mxu0 0
  %80 = vmatpush.bf16.msra.mxu0 0
  %81 = vmatpush.bf16.msra.mxu0 %v65
  %82 = vmatpush.bf16.msra.mxu0 %v64
  %83 = vmatpush.bf16.msra.mxu0 %v63
  %84 = vmatpush.bf16.msra.mxu0 %v62
  %85 = vmatmul.bf16.gmra.mxu0 %v72
  %v86 = vpop.f32.mrf.mxu0
  %v87 = vadd.f32 0.0, %v86
  %v88 = vpop.f32.mrf.mxu0
  %v89 = vadd.f32 0.0, %v88
  %90 = vmatmul.bf16.gmra.mxu0 %v75
  %v91 = vpop.f32.mrf.mxu0
  %v92 = vadd.f32 0.0, %v91
  %v93 = vpop.f32.mrf.mxu0
  %v94 = vadd.f32 0.0, %v93
  %95 = vdwg.mxu0
  %vm96 = vcmask 261120
  %v97 = vsel %vm96, %v87, 0.0
  %v98 = vsel %vm96, %v89, 0.0
  %v99 = vadd.f32 %v97, %v98
  %v100 = vrot.slane %v99, 4
  %v101 = vadd.f32 %v99, %v100
  %v102 = vrot.slane %v101, 2
  %v103 = vadd.f32 %v101, %v102
  %v104 = vrot.slane %v103, 1
  %v105 = vadd.f32 %v103, %v104
  %v106 = vsel %vm96, %v92, 0.0
  %v107 = vsel %vm96, %v94, 0.0
  %v108 = vadd.f32 %v106, %v107
  %v109 = vrot.slane %v108, 4
  %v110 = vadd.f32 %v108, %v109
  %v111 = vrot.slane %v110, 2
  %v112 = vadd.f32 %v110, %v111
  %v113 = vrot.slane %v112, 1
  %v114 = vadd.f32 %v112, %v113
  %vm115 = vcmask 1040384
  %v116 = vsel %vm115, %v105, %v114
  %v117 = vpack.c.bf16 %v116, %v116
  %v118 = vld [vmem:[%s3] sm:$0x1]
  %v119 = vld [vmem:[%s3 + $0x1] sm:$0x1]
  %v120 = vld [vmem:[%s2] sm:$0xf]
  %v121 = vld [vmem:[%s2 + $0x4] sm:$0xf]
  %v122 = vld [vmem:[%s2 + $0x8] sm:$0xf]
  %v123 = vld [vmem:[%s2 + $0xc] sm:$0xf]
  %v125 = vperm.slane %v118, 0
  %v131 = vunpack.c.l.b16 %v120
  %v132 = vunpack.c.l.b16 %v121
  %v133 = vunpack.c.l.b16 %v122
  %v134 = vunpack.c.l.b16 %v123
  %v135 = vpack.c.b16 %v132, %v131
  %v136 = vpack.c.b16 %v134, %v133
  %v140 = vsel %vm96, %v117, 0
  %142 = vmatpush.bf16.msra.mxu0 0
  %143 = vmatpush.bf16.msra.mxu0 0
  %144 = vmatpush.bf16.msra.mxu0 0
  %145 = vmatpush.bf16.msra.mxu0 0
  %146 = vmatpush.bf16.msra.mxu0 0
  %147 = vmatpush.bf16.msra.mxu0 0
  %148 = vmatpush.bf16.msra.mxu0 %v136
  %149 = vmatpush.bf16.msra.mxu0 %v135
  %150 = vmatmul.bf16.gmra.mxu0 %v140
  %v151 = vpop.f32.mrf.mxu0
  %v152 = vadd.f32 %v125, %v151
  %v153 = vpop.f32.mrf.mxu0
  %154 = vdwg.mxu0
  %v155 = vmul.f32 %v152, %v152
  %v156 = vmul.f32 %v152, %v155
  %v157 = vmul.f32 %v156, 0.044715
  %v158 = vadd.f32 %v152, %v157
  %v159 = vmul.f32 %v158, 0.7978846
  %v160 = vtanh.pop %v159
  %v161 = vadd.f32 %v160, 1.0
  %v162 = vmul.f32 %v161, 0.5
  %v163 = vmul.f32 %v152, %v162
  %v164 = vpack.c.bf16 %v163, %v163
  %v165 = vld [vmem:[%s4] sm:$0xf]
  %v166 = vld [vmem:[%s4 + $0x4] sm:$0xf]
  %v167 = vld [vmem:[%s4 + $0x8] sm:$0xf]
  %v168 = vld [vmem:[%s4 + $0xc] sm:$0xf]
  %v169 = vld [vmem:[%s4 + $0x10] sm:$0xf]
  %v170 = vld [vmem:[%s4 + $0x14] sm:$0xf]
  %v171 = vld [vmem:[%s4 + $0x18] sm:$0xf]
  %v172 = vld [vmem:[%s4 + $0x1c] sm:$0xf]
  %v173 = vld [vmem:[%s4 + $0x20] sm:$0xf]
  %v174 = vld [vmem:[%s4 + $0x24] sm:$0xf]
  %v175 = vld [vmem:[%s4 + $0x28] sm:$0xf]
  %v176 = vld [vmem:[%s4 + $0x2c] sm:$0xf]
  %v177 = vld [vmem:[%s4 + $0x30] sm:$0xf]
  %v178 = vld [vmem:[%s4 + $0x34] sm:$0xf]
  %v179 = vld [vmem:[%s4 + $0x38] sm:$0xf]
  %v180 = vld [vmem:[%s4 + $0x3c] sm:$0xf]
  %v182 = vperm.slane %v119, 0
  %v200 = vunpack.c.l.b16 %v165
  %v201 = vunpack.c.l.b16 %v166
  %v202 = vunpack.c.l.b16 %v167
  %v203 = vunpack.c.l.b16 %v168
  %v204 = vunpack.c.l.b16 %v169
  %v205 = vunpack.c.l.b16 %v170
  %v206 = vunpack.c.l.b16 %v171
  %v207 = vunpack.c.l.b16 %v172
  %v208 = vunpack.c.l.b16 %v173
  %v209 = vunpack.c.l.b16 %v174
  %v210 = vunpack.c.l.b16 %v175
  %v211 = vunpack.c.l.b16 %v176
  %v212 = vunpack.c.l.b16 %v177
  %v213 = vunpack.c.l.b16 %v178
  %v214 = vunpack.c.l.b16 %v179
  %v215 = vunpack.c.l.b16 %v180
  %v216 = vpack.c.b16 %v201, %v200
  %v217 = vpack.c.b16 %v203, %v202
  %v218 = vpack.c.b16 %v205, %v204
  %v219 = vpack.c.b16 %v207, %v206
  %v220 = vpack.c.b16 %v209, %v208
  %v221 = vpack.c.b16 %v211, %v210
  %v222 = vpack.c.b16 %v213, %v212
  %v223 = vpack.c.b16 %v215, %v214
  %232 = vmatpush.bf16.msra.mxu0 %v223
  %233 = vmatpush.bf16.msra.mxu0 %v222
  %234 = vmatpush.bf16.msra.mxu0 %v221
  %235 = vmatpush.bf16.msra.mxu0 %v220
  %236 = vmatpush.bf16.msra.mxu0 %v219
  %237 = vmatpush.bf16.msra.mxu0 %v218
  %238 = vmatpush.bf16.msra.mxu0 %v217
  %239 = vmatpush.bf16.msra.mxu0 %v216
  %240 = vmatmul.bf16.gmra.mxu0 %v164
  %v241 = vpop.f32.mrf.mxu0
  %v242 = vadd.f32 %v182, %v241
  %v243 = vpop.f32.mrf.mxu0
  %244 = vdwg.mxu0
  %v245 = vmul.f32 %v242, %v242
  %vm246 = vcmask 254976
  %v247 = vsel %vm246, %v245, 0.0
  %248 = vadd.xlane.f32.xlu0 %v247
  %v249 = vpop.xlane.xlu0 %248
  %v250 = vadd.f32 %v249, 1e-12
  %v251 = vrsqrt.pop %v250
  %v252 = vmul.f32 %v251, %v250
  %v253 = vmul.f32 %v252, %v251
  %v254 = vmul.f32 0.5, %v253
  %v255 = vsub.f32 1.5, %v254
  %v256 = vmul.f32 %v251, %v255
  %vm257 = vweird.f32 %v250
  %vm258 = vweird.f32 %v251
  %vm259 = vmor %vm257, %vm258
  %v260 = vsel %vm259, %v251, %v256
  %v261 = vmul.f32 %v242, %v260
  %263 = vrot.lane.b32.xlu0 %v245, 96
  %v264 = vpop.permute.xlu0 %263
  %v266 = vsel %vm246, %v264, 0.0
  %267 = vadd.xlane.f32.xlu0 %v266
  %v268 = vpop.xlane.xlu0 %267
  %v269 = vadd.f32 %v268, 1e-12
  %v270 = vrsqrt.pop %v269
  %v271 = vmul.f32 %v270, %v269
  %v272 = vmul.f32 %v271, %v270
  %v273 = vmul.f32 0.5, %v272
  %v274 = vsub.f32 1.5, %v273
  %v275 = vmul.f32 %v270, %v274
  %vm276 = vweird.f32 %v269
  %vm277 = vweird.f32 %v270
  %vm278 = vmor %vm276, %vm277
  %v279 = vsel %vm278, %v270, %v275
  %v280 = vmul.f32 %v242, %v279
  %v281 = vsel %vm96, %v261, %v280
  %v282 = vld [vmem:[%s5] sm:$0xff]
  %v283 = vld [vmem:[%s5 + $0x8] sm:$0xff]
  %v284 = vld [vmem:[%s5 + $0x10] sm:$0xff]
  %v285 = vld [vmem:[%s5 + $0x18] sm:$0xff]
  %v286 = vld [vmem:[%s5 + $0x20] sm:$0xff]
  %v287 = vld [vmem:[%s5 + $0x28] sm:$0xff]
  %v288 = vld [vmem:[%s5 + $0x30] sm:$0xff]
  %v289 = vld [vmem:[%s5 + $0x38] sm:$0xff]
  %v290 = vld [vmem:[%s5 + $0x40] sm:$0xff]
  %v291 = vld [vmem:[%s5 + $0x48] sm:$0xff]
  %v292 = vld [vmem:[%s5 + $0x50] sm:$0xff]
  %v293 = vld [vmem:[%s5 + $0x58] sm:$0xff]
  %v294 = vld [vmem:[%s5 + $0x60] sm:$0xff]
  %v295 = vld [vmem:[%s5 + $0x68] sm:$0xff]
  %v296 = vld [vmem:[%s5 + $0x70] sm:$0xff]
  %v297 = vld [vmem:[%s5 + $0x78] sm:$0xff]
  %v299 = vsel %vm70, %v281, 0
  %301 = vmatpush.msra.mxu0 0.0
  %302 = vmatpush.msra.mxu0 0.0
  %303 = vmatpush.msra.mxu0 0.0
  %304 = vmatpush.msra.mxu0 0.0
  %305 = vmatpush.msra.mxu0 0.0
  %306 = vmatpush.msra.mxu0 0.0
  %307 = vmatpush.msra.mxu0 0.0
  %308 = vmatpush.msra.mxu0 0.0
  %309 = vmatpush.msra.mxu0 %v296
  %310 = vmatpush.msra.mxu0 %v294
  %311 = vmatpush.msra.mxu0 %v292
  %312 = vmatpush.msra.mxu0 %v290
  %313 = vmatpush.msra.mxu0 %v288
  %314 = vmatpush.msra.mxu0 %v286
  %315 = vmatpush.msra.mxu0 %v284
  %316 = vmatpush.msra.mxu0 %v282
  %317 = vmatmul.f32.gmra.mxu0 %v299
  %v318 = vpop.f32.mrf.mxu0
  %v319 = vadd.f32 0.0, %v318
  %320 = vdwg.mxu0
  %321 = vmatpush.msra.mxu0 0.0
  %322 = vmatpush.msra.mxu0 0.0
  %323 = vmatpush.msra.mxu0 0.0
  %324 = vmatpush.msra.mxu0 0.0
  %325 = vmatpush.msra.mxu0 0.0
  %326 = vmatpush.msra.mxu0 0.0
  %327 = vmatpush.msra.mxu0 0.0
  %328 = vmatpush.msra.mxu0 0.0
  %329 = vmatpush.msra.mxu0 %v297
  %330 = vmatpush.msra.mxu0 %v295
  %331 = vmatpush.msra.mxu0 %v293
  %332 = vmatpush.msra.mxu0 %v291
  %333 = vmatpush.msra.mxu0 %v289
  %334 = vmatpush.msra.mxu0 %v287
  %335 = vmatpush.msra.mxu0 %v285
  %336 = vmatpush.msra.mxu0 %v283
  %337 = vmatmul.f32.gmra.mxu0 %v299
  %v338 = vpop.f32.mrf.mxu0
  %v339 = vadd.f32 0.0, %v338
  %340 = vdwg.mxu0
  %v343 = vrot.slane %v339, 6
  %vm344 = vcmask 1041408
  %v345 = vsel %vm344, %v319, %v343
  %347 = vst [vmem:[%s6] sm:$0xf] %v345
  // Predicated region
  $region26: #{teacher_student_forward.1} parent=0 // pred_check
    _
  $region27: #{teacher_student_forward.1} parent=0 // pred_check_branch
    %349 = sbr.rel (0) target = $region29
  $region28: #{teacher_student_forward.1} parent=0 // pred_region
    _
  $region29: #{teacher_student_forward.1} parent=0 // pred_fallthru
    _
  // Predicated region
  $region30: #{teacher_student_forward.1} parent=0 // pred_check
    _
  $region31: #{teacher_student_forward.1} parent=0 // pred_check_branch
    %351 = sbr.rel (0) target = $region33
  $region32: #{teacher_student_forward.1} parent=0 // pred_region
    _
  $region33: #{teacher_student_forward.1} parent=0 // pred_fallthru
    _

</llo_original>
